<compile_context>
chip_gen: v7x
topology: tpu7x:2x2x1
jax: 0.10.0
libtpu: 0.0.40
codegen_flags: <defaults>
</compile_context>

<pallas_src>
import functools

import jax
import jax.numpy as jnp
from jax import lax
from jax.experimental import pallas as pl
from jax.experimental.pallas import tpu as pltpu


def _round_up(v: int, m: int) -> int:
    return (v + m - 1) // m * m


def _choose_tq(S: int, mm_itemsize: int) -> int:
    """Pick the query-tile size: a 128-multiple divisor of S within a VMEM budget."""
    if S < 256 or S % 128 != 0:
        # Tiny or awkward spatial extents: one tile covers all queries.
        # TODO(synk): for huge S that is not a multiple of 128, add a cdiv grid
        # with masked edge tiles instead of a single monolithic tile.
        return S
    budget = 20 * 1024 * 1024                 # transient (TQ, S) tiles: logits f32 + exp f32 + exp(mm)
    per_row = (8 + mm_itemsize) * S
    cap = max(128, min(512, S // 2, (budget // per_row) // 128 * 128))
    tq = 128                                   # 128 always divides S here
    for t in range(128, cap + 1, 128):
        if S % t == 0:
            tq = t
    return tq


def _self_attention_kernel(x_ref, w_ref, b_ref, gamma_ref, y_ref,
                           f_s, g_s, h_s, *, tq: int, pp: int, c: int):
    """One (batch, query-tile) grid step.

    x_ref  : (1, C, S)   full spatial extent, resident per batch element
    w_ref  : (2*Pp+C+1, C) fused [W_f; W_g; W_h; 0] projection weights
    b_ref  : (2*Pp+C+1, 1) fused [b_f; b_g; b_h; 1] biases
    gamma_ref : (1, 1) SMEM scalar
    y_ref  : (1, C, TQ)  output slice for this query tile
    f_s    : (Pp,  S)    key   projection, resident scratch (mm dtype)
    g_s    : (Pp,  S)    query projection, resident scratch (mm dtype)
    h_s    : (C+1, S)    value projection + all-ones row,   (mm dtype)
    """
    q = pl.program_id(1)

    # ---- once per batch element: fused projections (f, g, h, ones) -----------
    @pl.when(q == 0)
    def _():
        x_full = x_ref[0].astype(jnp.float32)                          # (C, S)
        fgh = jnp.dot(w_ref[...], x_full,
                      preferred_element_type=jnp.float32) + b_ref[...]  # (2Pp+C+1, S)
        f_s[...] = fgh[:pp].astype(f_s.dtype)
        g_s[...] = fgh[pp:2 * pp].astype(g_s.dtype)
        h_s[...] = fgh[2 * pp:].astype(h_s.dtype)        # h rows + all-ones row

    start = pl.multiple_of(q * tq, tq)

    # ---- attention logits for this query tile: (TQ, S) -----------------------
    g_t = g_s[:, pl.ds(start, tq)]                                       # (Pp, TQ)
    logits = lax.dot_general(g_t, f_s[...], (((0,), (0,)), ((), ())),
                             preferred_element_type=jnp.float32)         # (TQ, S)

    # ---- softmax with deferred normalization (no S^2 divide pass) ------------
    m = jnp.max(logits, axis=-1, keepdims=True)                          # (TQ, 1)
    e = jnp.exp(logits - m)                                              # (TQ, S) f32

    # ---- value matmul; the last (ones) row of h_s yields the row-sums --------
    res = lax.dot_general(h_s[...], e.astype(h_s.dtype),
                          (((1,), (1,)), ((), ())),
                          preferred_element_type=jnp.float32)            # (C+1, TQ)
    inv = pl.reciprocal(res[c:c + 1, :], approx=True)                    # (1, TQ)
    o = res[:c, :] * inv                                                 # (C, TQ)

    # ---- residual blend -------------------------------------------------------
    gamma = gamma_ref[0, 0]
    x_q = x_ref[0, :, pl.ds(start, tq)].astype(jnp.float32)              # (C, TQ)
    y_ref[0] = (gamma * o + (1.0 - gamma) * x_q).astype(y_ref.dtype)


def self_attention(x, wf, bf, wg, bg, wh, bh, gamma,
                   *, mm_dtype=jnp.bfloat16, tq=None):
    """SelfAttention.forward; x: (N, C, H, W) NCHW, wf/wg: (P, C), wh: (C, C)."""
    N, C, H, W = x.shape
    P = wf.shape[0]
    S = H * W

    # Pad only the projection output dim to a sublane-friendly multiple of 8.
    # Padded f/g rows are all-zero, hence inert in the logits matmul.
    Pp = max(8, _round_up(P, 8))

    xf = x.reshape(N, C, S)

    # Fused projection: [W_f; W_g; W_h; 0-row] and [b_f; b_g; b_h; 1].
    # The trailing zero-weight / one-bias row makes the projection emit an
    # all-ones row, so the softmax denominator comes out of the value matmul.
    w_all = jnp.concatenate([
        jnp.pad(wf, ((0, Pp - P), (0, 0))),
        jnp.pad(wg, ((0, Pp - P), (0, 0))),
        wh,
        jnp.zeros((1, C), wh.dtype),
    ], axis=0).astype(jnp.float32)                                   # (2Pp+C+1, C)
    b_all = jnp.concatenate([
        jnp.pad(bf, (0, Pp - P)),
        jnp.pad(bg, (0, Pp - P)),
        bh,
        jnp.ones((1,), bh.dtype),
    ]).astype(jnp.float32).reshape(-1, 1)                            # (2Pp+C+1, 1)
    K = 2 * Pp + C + 1

    if tq is None:
        tq = _choose_tq(S, jnp.dtype(mm_dtype).itemsize)
    assert S % tq == 0, (S, tq)
    n_q = S // tq

    gamma_arr = jnp.asarray(gamma, jnp.float32).reshape(1, 1)

    grid_spec = pltpu.PrefetchScalarGridSpec(
        num_scalar_prefetch=0,
        grid=(N, n_q),
        in_specs=[
            pl.BlockSpec((1, C, S), lambda n, q: (n, 0, 0)),   # x: full spatial, resident per n
            pl.BlockSpec((K, C), lambda n, q: (0, 0)),         # fused weights (resident)
            pl.BlockSpec((K, 1), lambda n, q: (0, 0)),         # fused biases  (resident)
            pl.BlockSpec(memory_space=pltpu.MemorySpace.SMEM), # gamma scalar
        ],
        out_specs=pl.BlockSpec((1, C, tq), lambda n, q: (n, 0, q)),
        scratch_shapes=[
            pltpu.VMEM((Pp, S), mm_dtype),        # f  (keys)
            pltpu.VMEM((Pp, S), mm_dtype),        # g  (queries)
            pltpu.VMEM((C + 1, S), mm_dtype),     # h  (values) + ones row
        ],
    )

    itemsize = jnp.dtype(x.dtype).itemsize
    flops = N * (2 * K * C * S              # fused projection (once per n)
                 + 2 * Pp * S * S           # logits
                 + 2 * (C + 1) * S * S      # values (+ denominator row)
                 + 6 * S * S)               # softmax elementwise
    cost = pl.CostEstimate(flops=flops, transcendentals=N * S * S,
                           bytes_accessed=2 * N * C * S * itemsize)

    y = pl.pallas_call(
        functools.partial(_self_attention_kernel, tq=tq, pp=Pp, c=C),
        out_shape=jax.ShapeDtypeStruct((N, C, S), x.dtype),
        grid_spec=grid_spec,
        compiler_params=pltpu.CompilerParams(
            dimension_semantics=("parallel", "arbitrary"),
            vmem_limit_bytes=48 * 1024 * 1024,   # safe under v7x's 64 MiB physical VMEM
        ),
        cost_estimate=cost,
    )(xf, w_all, b_all, gamma_arr)

    return y.reshape(N, C, H, W)


def _reference(x, wf, bf, wg, bg, wh, bh, gamma):
    """Pure-JAX (f32) mirror of the PyTorch SelfAttention.forward."""
    N, C, H, W = x.shape
    S = H * W
    xf = x.reshape(N, C, S)
    f = jnp.einsum('pc,ncs->nps', wf, xf) + bf[None, :, None]
    g = jnp.einsum('pc,ncs->nps', wg, xf) + bg[None, :, None]
    h = jnp.einsum('oc,ncs->nos', wh, xf) + bh[None, :, None]
    aff = jnp.einsum('npi,npj->nij', g, f)             # (N, S, S)
    aff = jax.nn.softmax(aff, axis=-1)
    o = jnp.einsum('nij,ncj->nci', aff, h)             # (N, C, S)
    y = gamma * o + (1.0 - gamma) * xf
    return y.reshape(N, C, H, W)


if __name__ == "__main__":
    key = jax.random.PRNGKey(0)
    N, C, P, H, W = 2, 4, 2, 16, 16          # feat_dim=4, proj_dim=2, 16x16 spatial
    gamma = 0.3

    kx, kwf, kbf, kwg, kbg, kwh, kbh = jax.random.split(key, 7)
    x = jax.random.normal(kx, (N, C, H, W), dtype=jnp.float32)
    wf = 0.02 * jax.random.normal(kwf, (P, C), dtype=jnp.float32)
    wg = 0.02 * jax.random.normal(kwg, (P, C), dtype=jnp.float32)
    wh = 0.02 * jax.random.normal(kwh, (C, C), dtype=jnp.float32)
    bf = 0.01 * jax.random.normal(kbf, (P,), dtype=jnp.float32)
    bg = 0.01 * jax.random.normal(kbg, (P,), dtype=jnp.float32)
    bh = 0.01 * jax.random.normal(kbh, (C,), dtype=jnp.float32)

    y = self_attention(x, wf, bf, wg, bg, wh, bh, gamma)
    y = jax.block_until_ready(y)

    ref = _reference(x, wf, bf, wg, bg, wh, bh, gamma)
    assert y.shape == x.shape and y.dtype == x.dtype
    # Tolerance sized for bf16 MXU operands (exp/reductions/residual stay f32).
    assert jnp.allclose(y, ref, rtol=2e-4, atol=3e-4), "mismatch vs reference"
    print("KERNEL_OK")
</pallas_src>

<mosaic_0001>
module attributes {stable_mosaic.version = 11 : i64} {
  func.func @_self_attention_kernel(%arg0: i32, %arg1: i32, %arg2: memref<1x4x256xf32, #tpu.memory_space<vmem>>, %arg3: memref<21x4xf32, #tpu.memory_space<vmem>>, %arg4: memref<21x1xf32, #tpu.memory_space<vmem>>, %arg5: memref<1x1xf32, #tpu.memory_space<smem>>, %arg6: memref<1x4x128xf32, #tpu.memory_space<vmem>>, %arg7: memref<8x256xbf16, #tpu.memory_space<vmem>>, %arg8: memref<8x256xbf16, #tpu.memory_space<vmem>>, %arg9: memref<5x256xbf16, #tpu.memory_space<vmem>>) attributes {dimension_semantics = [#tpu.dimension_semantics<parallel>, #tpu.dimension_semantics<arbitrary>], iteration_bounds = array<i64: 2, 2>, scalar_prefetch = 0 : i64, scratch_operands = 3 : i64, tpu.core_type = #tpu.core_type<tc>, window_params = [{transform_indices = @transform_0, window_bounds = array<i64: 1, 4, 256>}, {pipeline_mode = #tpu.pipeline_mode<synchronous>, transform_indices = @transform_1, window_bounds = array<i64: 21, 4>}, {pipeline_mode = #tpu.pipeline_mode<synchronous>, transform_indices = @transform_2, window_bounds = array<i64: 21, 1>}, {transform_indices = @transform_3, window_bounds = array<i64: 1, 1>}, {transform_indices = @transform_4, window_bounds = array<i64: 1, 4, 128>}]} {
    %c0_i32 = arith.constant 0 : i32
    %0 = arith.cmpi eq, %arg1, %c0_i32 : i32
    %1 = arith.extui %0 : i1 to i32
    %c0_i32_0 = arith.constant 0 : i32
    %2 = arith.cmpi ne, %1, %c0_i32_0 : i32
    scf.if %2 {
      %c0_15 = arith.constant 0 : index
      %c0_16 = arith.constant 0 : index
      %c0_17 = arith.constant 0 : index
      %35 = vector.load %arg2[%c0_15, %c0_16, %c0_17] : memref<1x4x256xf32, #tpu.memory_space<vmem>>, vector<1x4x256xf32>
      %36 = vector.shape_cast %35 : vector<1x4x256xf32> to vector<4x256xf32>
      %c0_18 = arith.constant 0 : index
      %c0_19 = arith.constant 0 : index
      %37 = vector.load %arg3[%c0_18, %c0_19] : memref<21x4xf32, #tpu.memory_space<vmem>>, vector<21x4xf32>
      %cst_20 = arith.constant dense<0.000000e+00> : vector<21x256xf32>
      %38 = tpu.matmul %37, %36, %cst_20 {dimension_numbers = #tpu.dot_dimension_numbers<[1], [0], [0], [1], [0, 0, 1, 1], [], []>} : vector<21x4xf32>, vector<4x256xf32>, vector<21x256xf32> -> vector<21x256xf32>
      %c0_21 = arith.constant 0 : index
      %c0_22 = arith.constant 0 : index
      %39 = vector.load %arg4[%c0_21, %c0_22] : memref<21x1xf32, #tpu.memory_space<vmem>>, vector<21x1xf32>
      %40 = vector.broadcast %39 : vector<21x1xf32> to vector<21x256xf32>
      %41 = arith.addf %38, %40 : vector<21x256xf32>
      %42 = vector.extract_strided_slice %41 {offsets = [0, 0], sizes = [8, 256], strides = [1, 1]} : vector<21x256xf32> to vector<8x256xf32>
      %43 = arith.truncf %42 : vector<8x256xf32> to vector<8x256xbf16>
      %c0_23 = arith.constant 0 : index
      %c0_24 = arith.constant 0 : index
      %44 = vector.load %arg7[%c0_23, %c0_24] : memref<8x256xbf16, #tpu.memory_space<vmem>>, vector<8x256xbf16>
      tpu.vector_store %arg7[%c0_23, %c0_24], %43 {strides = array<i32>} : memref<8x256xbf16, #tpu.memory_space<vmem>>, vector<8x256xbf16>,
      %45 = vector.extract_strided_slice %41 {offsets = [8, 0], sizes = [8, 256], strides = [1, 1]} : vector<21x256xf32> to vector<8x256xf32>
      %46 = arith.truncf %45 : vector<8x256xf32> to vector<8x256xbf16>
      %c0_25 = arith.constant 0 : index
      %c0_26 = arith.constant 0 : index
      %47 = vector.load %arg8[%c0_25, %c0_26] : memref<8x256xbf16, #tpu.memory_space<vmem>>, vector<8x256xbf16>
      tpu.vector_store %arg8[%c0_25, %c0_26], %46 {strides = array<i32>} : memref<8x256xbf16, #tpu.memory_space<vmem>>, vector<8x256xbf16>,
      %48 = vector.extract_strided_slice %41 {offsets = [16, 0], sizes = [5, 256], strides = [1, 1]} : vector<21x256xf32> to vector<5x256xf32>
      %49 = arith.truncf %48 : vector<5x256xf32> to vector<5x256xbf16>
      %c0_27 = arith.constant 0 : index
      %c0_28 = arith.constant 0 : index
      %50 = vector.load %arg9[%c0_27, %c0_28] : memref<5x256xbf16, #tpu.memory_space<vmem>>, vector<5x256xbf16>
      tpu.vector_store %arg9[%c0_27, %c0_28], %49 {strides = array<i32>} : memref<5x256xbf16, #tpu.memory_space<vmem>>, vector<5x256xbf16>,
    } else {
    }
    %c128_i32 = arith.constant 128 : i32
    %3 = arith.muli %arg1, %c128_i32 : i32
    %4 = tpu.assume_multiple %3, 128 : i32
    %c0 = arith.constant 0 : index
    %5 = arith.index_cast %4 : i32 to index
    %6 = vector.load %arg8[%c0, %5] : memref<8x256xbf16, #tpu.memory_space<vmem>>, vector<8x128xbf16>
    %c0_1 = arith.constant 0 : index
    %c0_2 = arith.constant 0 : index
    %7 = vector.load %arg7[%c0_1, %c0_2] : memref<8x256xbf16, #tpu.memory_space<vmem>>, vector<8x256xbf16>
    %cst = arith.constant dense<0.000000e+00> : vector<128x256xf32>
    %8 = tpu.matmul %6, %7, %cst {dimension_numbers = #tpu.dot_dimension_numbers<[0], [0], [1], [1], [0, 1, 1, 1], [], []>} : vector<8x128xbf16>, vector<8x256xbf16>, vector<128x256xf32> -> vector<128x256xf32>
    %cst_3 = arith.constant dense<0xFF800000> : vector<128xf32>
    %9 = vector.multi_reduction <maximumf>, %8, %cst_3 [1] : vector<128x256xf32> to vector<128xf32>
    %10 = vector.shape_cast %9 : vector<128xf32> to vector<128x1xf32>
    %11 = vector.broadcast %10 : vector<128x1xf32> to vector<128x256xf32>
    %12 = arith.subf %8, %11 : vector<128x256xf32>
    %13 = math.exp %12 : vector<128x256xf32>
    %c0_4 = arith.constant 0 : index
    %c0_5 = arith.constant 0 : index
    %14 = vector.load %arg9[%c0_4, %c0_5] : memref<5x256xbf16, #tpu.memory_space<vmem>>, vector<5x256xbf16>
    %15 = arith.truncf %13 : vector<128x256xf32> to vector<128x256xbf16>
    %cst_6 = arith.constant dense<0.000000e+00> : vector<5x128xf32>
    %16 = tpu.matmul %14, %15, %cst_6 {dimension_numbers = #tpu.dot_dimension_numbers<[1], [1], [0], [0], [0, 0, 1, 0], [], []>} : vector<5x256xbf16>, vector<128x256xbf16>, vector<5x128xf32> -> vector<5x128xf32>
    %17 = vector.extract_strided_slice %16 {offsets = [4, 0], sizes = [1, 128], strides = [1, 1]} : vector<5x128xf32> to vector<1x128xf32>
    %18 = tpu.reciprocal %17 {approx = true} : vector<1x128xf32> -> vector<1x128xf32>
    %19 = vector.extract_strided_slice %16 {offsets = [0, 0], sizes = [4, 128], strides = [1, 1]} : vector<5x128xf32> to vector<4x128xf32>
    %20 = vector.broadcast %18 : vector<1x128xf32> to vector<4x128xf32>
    %21 = arith.mulf %19, %20 : vector<4x128xf32>
    %c0_7 = arith.constant 0 : index
    %c0_8 = arith.constant 0 : index
    %22 = memref.load %arg5[%c0_7, %c0_8] : memref<1x1xf32, #tpu.memory_space<smem>>
    %c0_9 = arith.constant 0 : index
    %c0_10 = arith.constant 0 : index
    %23 = arith.index_cast %4 : i32 to index
    %24 = vector.load %arg2[%c0_9, %c0_10, %23] : memref<1x4x256xf32, #tpu.memory_space<vmem>>, vector<1x4x128xf32>
    %25 = vector.shape_cast %24 : vector<1x4x128xf32> to vector<4x128xf32>
    %26 = vector.broadcast %22 : f32 to vector<4x128xf32>
    %27 = arith.mulf %26, %21 : vector<4x128xf32>
    %cst_11 = arith.constant 1.000000e+00 : f32
    %28 = arith.subf %cst_11, %22 : f32
    %29 = vector.broadcast %28 : f32 to vector<4x128xf32>
    %30 = arith.mulf %29, %25 : vector<4x128xf32>
    %31 = arith.addf %27, %30 : vector<4x128xf32>
    %c0_12 = arith.constant 0 : index
    %c0_13 = arith.constant 0 : index
    %c0_14 = arith.constant 0 : index
    %32 = vector.load %arg6[%c0_12, %c0_13, %c0_14] : memref<1x4x128xf32, #tpu.memory_space<vmem>>, vector<1x4x128xf32>
    %33 = vector.shape_cast %32 : vector<1x4x128xf32> to vector<4x128xf32>
    %34 = vector.shape_cast %31 : vector<4x128xf32> to vector<1x4x128xf32>
    tpu.vector_store %arg6[%c0_12, %c0_13, %c0_14], %34 {strides = array<i32>} : memref<1x4x128xf32, #tpu.memory_space<vmem>>, vector<1x4x128xf32>,
    return
  }
  func.func @transform_0(%arg0: i32, %arg1: i32) -> (i32, i32, i32) {
    %c0_i32 = arith.constant 0 : i32
    %c0_i32_0 = arith.constant 0 : i32
    %c0_i32_1 = arith.constant 0 : i32
    return %arg0, %c0_i32, %c0_i32_0 : i32, i32, i32
  }
  func.func @transform_1(%arg0: i32, %arg1: i32) -> (i32, i32) {
    %c0_i32 = arith.constant 0 : i32
    %c0_i32_0 = arith.constant 0 : i32
    %c0_i32_1 = arith.constant 0 : i32
    return %c0_i32, %c0_i32_0 : i32, i32
  }
  func.func @transform_2(%arg0: i32, %arg1: i32) -> (i32, i32) {
    %c0_i32 = arith.constant 0 : i32
    %c0_i32_0 = arith.constant 0 : i32
    %c0_i32_1 = arith.constant 0 : i32
    return %c0_i32, %c0_i32_0 : i32, i32
  }
  func.func @transform_3(%arg0: i32, %arg1: i32) -> (i32, i32) {
    %c0_i32 = arith.constant 0 : i32
    %c0_i32_0 = arith.constant 0 : i32
    %c0_i32_1 = arith.constant 0 : i32
    return %c0_i32, %c0_i32_0 : i32, i32
  }
  func.func @transform_4(%arg0: i32, %arg1: i32) -> (i32, i32, i32) {
    %c0_i32 = arith.constant 0 : i32
    %c0_i32_0 = arith.constant 0 : i32
    return %arg0, %c0_i32, %arg1 : i32, i32, i32
  }
}

</mosaic_0001>

<llo_original>
// kernel: tpu_custom_call.1
$region0: #{tpu_custom_call.1}
  #allocation0 [shape = 'u32[]', space=smem, size = 0x4, offset = 0x4, fixed_abs, tag = 'smem constant byte address 0x4 - core index']
  #allocation1 [shape = 'u32[144,128]{1,0:T(1,128)}', space=vmem, size = 0x12000, scoped, tag = 'internal scratch']
  #allocation2 [shape = 'bf16[8,256]{1,0:T(8,128)(2,1)}', space=vmem, size = 0x1000, scoped, tag = 'scratch operand']
  #allocation3 [shape = 'bf16[8,256]{1,0:T(8,128)(2,1)}', space=vmem, size = 0x1000, scoped, tag = 'scratch operand']
  #allocation4 [shape = 'bf16[5,256]{1,0:T(8,128)(2,1)}', space=vmem, size = 0x1000, scoped, tag = 'scratch operand']
  #allocation5 [shape = 'f32[1,1]{1,0:T(1,128)S(6)}', space=smem, size = 0x200, scoped, tag = 'scoped memory for tpu_custom_call.1']
  %s0 = inlined_call_operand.vmem [shape: f32[2,4,256], index: 0, kind: input, shape index: {}]
  %s1 = inlined_call_operand.vmem [shape: f32[21,4], index: 1, kind: input, shape index: {}]
  %s2 = inlined_call_operand.vmem [shape: f32[21,1], index: 2, kind: input, shape index: {}]
  %s3 = inlined_call_operand.<no memory space> [shape: f32[1,1], index: 3, kind: input, shape index: {}]
  %s4 = inlined_call_operand.hbm [shape: f32[2,4,256], index: 4, kind: output, shape index: {}]
  %s5 = sld [smem:[#allocation0]]
  $region53: #{tpu_custom_call.1} parent=0
    _
  %s7 = ssub.s32 1, %s5
  %s8 = scalar_select 0, %s7, %s5
  %9 = sst [smem:[#allocation5]] %s3
  $region1: #{tpu_custom_call.1} parent=0
    #allocation6 [shape = 'u8[4096]{0}', space=vmem, size = 0x1000, scoped, tag = 'output window, operand 0']
    #allocation7 [shape = 's32[2]{0}', space=sflag, size = 0x8, scoped, tag = 'scoped memory for tpu_custom_call.1']
    %10 = vsyncpa [#allocation7], 0
    %s11 = scalar_lea.sflag [#allocation7], 1
    %12 = vsyncpa %s11, 0
    loop: start=0, step=1, limit=6
    $region2: #{tpu_custom_call.1} parent=1 // loop_pre_header
      _
    $region3: #{tpu_custom_call.1} parent=1 // loop_header
      %s14 = sphi 0, %s18
      %p15 = scmp.ge.s32.totalorder %s14, 6
      %s21 = sphi 0, %s33
      %s22 = sphi 0, %s29
      %s23 = sphi 0, %s21
      %s24 = sphi 0, %s22
      %s25 = sphi 0, %s23
      %s26 = sphi 0, %s24
      %s36 = sphi 0, %s38
      %s39 = sphi 0, %s36
      %s40 = sphi 0, %s39
      %s56 = sphi 0, %s40
      %s60 = sphi 0, %s60
      %s62 = sphi 0, %s60
      %s63 = sphi 0, %s62
      %s77 = sphi 0, %s63
      %s81 = sphi 0, %s81
      %s83 = sphi 0, %s81
      %s84 = sphi 0, %s83
      %s98 = sphi 0, %s84
      %s102 = sphi 0, %s102
      %s104 = sphi 0, %s102
      %s105 = sphi 0, %s104
      %s119 = sphi 0, %s105
      %s127 = sphi 0, %s129
      %s130 = sphi 0, %s127
      %s131 = sphi 0, %s130
      %s147 = sphi 0, %s131
    $region4: #{tpu_custom_call.1} parent=1 // loop_header_branch
      %17 = sbr.rel (%p15) target = $region8
    $region5: #{tpu_custom_call.1} parent=1 // loop_body
      %s19 = ssub.s32 %s14, 1
      %s20 = ssub.s32 %s14, 2
      %s27 = sadd.s32 1, %s22
      %p28 = scmp.ge.s32.totalorder %s27, 2
      %s29 = scalar_select %p28, 0, %s27
      %s30 = sadd.s32 1, %s21
      %s31 = scalar_select %p28, %s30, %s21
      %p32 = scmp.ge.s32.totalorder %s31, 2
      %s33 = scalar_select %p32, 0, %s31
      %s34 = ssub.s32 %s21, %s33
      %p35 = scmp.eq.s32.totalorder %s34, 0
      %s37 = sadd.s32 %s36, 1
      %s38 = scalar_select %p35, %s36, %s37
      %p41 = pneg %p35
      %p42 = scmp.eq.s32.totalorder %s14, 3
      %p43 = por %p41, %p42
      %p44 = scmp.ne.s32.totalorder %s36, %s39
      %p45 = scmp.eq.s32.totalorder %s14, 0
      %p46 = por %p44, %p45
      %p47 = scmp.ne.s32.totalorder %s36, %s39
      %p48 = scmp.eq.s32.totalorder %s19, 3
      %p49 = por %p47, %p48
      %p50 = scmp.ne.s32.totalorder %s39, %s40
      %p51 = scmp.eq.s32.totalorder %s19, 0
      %p52 = por %p50, %p51
      %p53 = scmp.ne.s32.totalorder %s39, %s40
      %p54 = scmp.eq.s32.totalorder %s20, 3
      %p55 = por %p53, %p54
      %p57 = scmp.ne.s32.totalorder %s40, %s56
      %p58 = scmp.eq.s32.totalorder %s20, 0
      %p59 = por %p57, %p58
      %s61 = sadd.s32 %s60, 1
      %p64 = scmp.eq.s32.totalorder %s14, 3
      %p65 = scmp.ne.s32.totalorder %s60, %s62
      %p66 = scmp.eq.s32.totalorder %s14, 0
      %p67 = por %p65, %p66
      %p68 = scmp.ne.s32.totalorder %s60, %s62
      %p69 = scmp.eq.s32.totalorder %s19, 3
      %p70 = por %p68, %p69
      %p71 = scmp.ne.s32.totalorder %s62, %s63
      %p72 = scmp.eq.s32.totalorder %s19, 0
      %p73 = por %p71, %p72
      %p74 = scmp.ne.s32.totalorder %s62, %s63
      %p75 = scmp.eq.s32.totalorder %s20, 3
      %p76 = por %p74, %p75
      %p78 = scmp.ne.s32.totalorder %s63, %s77
      %p79 = scmp.eq.s32.totalorder %s20, 0
      %p80 = por %p78, %p79
      %s82 = sadd.s32 %s81, 1
      %p85 = scmp.eq.s32.totalorder %s14, 3
      %p86 = scmp.ne.s32.totalorder %s81, %s83
      %p87 = scmp.eq.s32.totalorder %s14, 0
      %p88 = por %p86, %p87
      %p89 = scmp.ne.s32.totalorder %s81, %s83
      %p90 = scmp.eq.s32.totalorder %s19, 3
      %p91 = por %p89, %p90
      %p92 = scmp.ne.s32.totalorder %s83, %s84
      %p93 = scmp.eq.s32.totalorder %s19, 0
      %p94 = por %p92, %p93
      %p95 = scmp.ne.s32.totalorder %s83, %s84
      %p96 = scmp.eq.s32.totalorder %s20, 3
      %p97 = por %p95, %p96
      %p99 = scmp.ne.s32.totalorder %s84, %s98
      %p100 = scmp.eq.s32.totalorder %s20, 0
      %p101 = por %p99, %p100
      %s103 = sadd.s32 %s102, 1
      %p106 = scmp.eq.s32.totalorder %s14, 3
      %p107 = scmp.ne.s32.totalorder %s102, %s104
      %p108 = scmp.eq.s32.totalorder %s14, 0
      %p109 = por %p107, %p108
      %p110 = scmp.ne.s32.totalorder %s102, %s104
      %p111 = scmp.eq.s32.totalorder %s19, 3
      %p112 = por %p110, %p111
      %p113 = scmp.ne.s32.totalorder %s104, %s105
      %p114 = scmp.eq.s32.totalorder %s19, 0
      %p115 = por %p113, %p114
      %p116 = scmp.ne.s32.totalorder %s104, %s105
      %p117 = scmp.eq.s32.totalorder %s20, 3
      %p118 = por %p116, %p117
      %p120 = scmp.ne.s32.totalorder %s105, %s119
      %p121 = scmp.eq.s32.totalorder %s20, 0
      %p122 = por %p120, %p121
      %s123 = ssub.s32 %s21, %s33
      %s124 = ssub.s32 %s22, %s29
      %s125 = sor.u32 %s123, %s124
      %p126 = scmp.eq.s32.totalorder %s125, 0
      %s128 = sadd.s32 %s127, 1
      %s129 = scalar_select %p126, %s127, %s128
      %p132 = pneg %p126
      %p133 = scmp.eq.s32.totalorder %s14, 3
      %p134 = por %p132, %p133
      %p135 = scmp.ne.s32.totalorder %s127, %s130
      %p136 = scmp.eq.s32.totalorder %s14, 0
      %p137 = por %p135, %p136
      %p138 = scmp.ne.s32.totalorder %s127, %s130
      %p139 = scmp.eq.s32.totalorder %s19, 3
      %p140 = por %p138, %p139
      %p141 = scmp.ne.s32.totalorder %s130, %s131
      %p142 = scmp.eq.s32.totalorder %s19, 0
      %p143 = por %p141, %p142
      %p144 = scmp.ne.s32.totalorder %s130, %s131
      %p145 = scmp.eq.s32.totalorder %s20, 3
      %p146 = por %p144, %p145
      %p148 = scmp.ne.s32.totalorder %s131, %s147
      %p149 = scmp.eq.s32.totalorder %s20, 0
      %p150 = por %p148, %p149
      %p151 = scmp.le.s32.totalorder 1, %s14
      %p152 = scmp.lt.s32.totalorder %s14, 5
      %p153 = pnand %p151, %p152
      %p154 = pneg %p153
      // Predicated region
      $region9: #{tpu_custom_call.1} parent=5 // pred_check
        _
      $region10: #{tpu_custom_call.1} parent=5 // pred_check_branch
        %156 = sbr.rel (%p153) target = $region12
      $region11: #{tpu_custom_call.1} parent=5 // pred_region
        %s157 = ssub.s32 %s14, 1
        // Predicated region
        $region13: #{tpu_custom_call.1} parent=11 // pred_check
          %p158 = pneg %p73
        $region14: #{tpu_custom_call.1} parent=11 // pred_check_branch
          %160 = sbr.rel (%p158) target = $region16
        $region15: #{tpu_custom_call.1} parent=11 // pred_region
          _
        $region16: #{tpu_custom_call.1} parent=11 // pred_fallthru
          _
        // Predicated region
        $region17: #{tpu_custom_call.1} parent=11 // pred_check
          %p161 = pneg %p94
        $region18: #{tpu_custom_call.1} parent=11 // pred_check_branch
          %163 = sbr.rel (%p161) target = $region20
        $region19: #{tpu_custom_call.1} parent=11 // pred_region
          _
        $region20: #{tpu_custom_call.1} parent=11 // pred_fallthru
          _
        // Predicated region
        $region21: #{tpu_custom_call.1} parent=11 // pred_check
          %p164 = pneg %p115
        $region22: #{tpu_custom_call.1} parent=11 // pred_check_branch
          %166 = sbr.rel (%p164) target = $region24
        $region23: #{tpu_custom_call.1} parent=11 // pred_region
          _
        $region24: #{tpu_custom_call.1} parent=11 // pred_fallthru
          _
      $region12: #{tpu_custom_call.1} parent=5 // pred_fallthru
        _
      %p167 = scmp.lt.s32.totalorder %s14, 4
      // Predicated region
      $region25: #{tpu_custom_call.1} parent=5 // pred_check
        %p168 = pneg %p167
      $region26: #{tpu_custom_call.1} parent=5 // pred_check_branch
        %170 = sbr.rel (%p168) target = $region28
      $region27: #{tpu_custom_call.1} parent=5 // pred_region
        // Predicated region
        $region29: #{tpu_custom_call.1} parent=27 // pred_check
          %p171 = pneg %p46
        $region30: #{tpu_custom_call.1} parent=27 // pred_check_branch
          %173 = sbr.rel (%p171) target = $region32
        $region31: #{tpu_custom_call.1} parent=27 // pred_region
          %p174 = scmp.lt.s32.totalorder %s21, 1
          %s175 = scalar_select %p174, %s21, 1
          %s176 = smul.addr %s175, 2
          %s177 = smul.addr %s176, 4
          %s178 = scalar_lea.vmem %s0, %s177
        $region32: #{tpu_custom_call.1} parent=27 // pred_fallthru
          _
      $region28: #{tpu_custom_call.1} parent=5 // pred_fallthru
        _
      %p179 = scmp.le.s32.totalorder 1, %s14
      %p180 = scmp.lt.s32.totalorder %s14, 5
      %p181 = pnand %p179, %p180
      %p182 = pneg %p181
      // Predicated region
      $region33: #{tpu_custom_call.1} parent=5 // pred_check
        _
      $region34: #{tpu_custom_call.1} parent=5 // pred_check_branch
        %184 = sbr.rel (%p181) target = $region36
      $region35: #{tpu_custom_call.1} parent=5 // pred_region
        %s185 = ssub.s32 %s14, 1
        %p186 = scmp.lt.s32.totalorder %s23, 1
        %s187 = scalar_select %p186, %s23, 1
        %s188 = smul.addr %s187, 2
        %s189 = smul.addr %s188, 4
        %s190 = scalar_lea.vmem %s0, %s189
        %p191 = pneg %p52
        %p192 = pneg %p49
        %p193 = pneg %p73
        %p194 = pneg %p70
        %p195 = pneg %p94
        %p196 = pneg %p91
        %p197 = pneg %p115
        %p198 = pneg %p112
        %p199 = pneg %p143
        %p200 = pneg %p140
        %s201 = sand.u32 %s130, 1
        %s202 = scalar_lea.sflag [#allocation7], %s201
        %s203 = sand.u32 %s130, 1
        %s204 = smul.addr %s203, 4
        %s205 = scalar_lea.vmem [#allocation6], %s204
        %p206 = scmp.lt.s32.totalorder %s23, 1
        %s207 = scalar_select %p206, %s23, 1
        %s208 = smul.addr %s207, 2
        %s209 = smul.addr %s208, 4
        %s210 = scalar_lea.vmem %s0, %s209
        %p212 = scmp.eq.s32.totalorder %s24, 0
        // Predicated region
        $region37: #{tpu_custom_call.1} parent=35 // pred_check
          %p213 = pneg %p212
        $region38: #{tpu_custom_call.1} parent=35 // pred_check_branch
          %215 = sbr.rel (%p213) target = $region40
        $region39: #{tpu_custom_call.1} parent=35 // pred_region
          %v216 = vld [vmem:[%s210] sm:$0xff]
          %v217 = vld [vmem:[%s1] sm:$0xff]
          %v218 = vld [vmem:[%s1 + $0x8] sm:$0xff]
          %v219 = vld [vmem:[%s1 + $0x10] sm:$0x1f]
          %v220 = vld [vmem:[%s2] sm:$0xff]
          %v221 = vld [vmem:[%s2 + $0x8] sm:$0xff]
          %v222 = vld [vmem:[%s2 + $0x10] sm:$0x1f]
          %224 = vset.pattern.permute.xlu0 0
          %225 = vperm.xlu0 %224, %v220
          %v226 = vpop.permute.xlu0 %225
          %229 = vset.pattern.permute.xlu0 0
          %230 = vperm.xlu0 %229, %v221
          %v231 = vpop.permute.xlu0 %230
          %234 = vset.pattern.permute.xlu0 0
          %235 = vperm.xlu0 %234, %v222
          %v236 = vpop.permute.xlu0 %235
          %v239 = vcombine.high %v216, %v216
          %vm240 = vcmask 31744
          %v242 = vsel %vm240, %v217, 0
          %v245 = vsel %vm240, %v218, 0
          %v248 = vsel %vm240, %v219, 0
          %vm250 = vcmask 1043456
          %v251 = vsel %vm250, %v216, 0
          %v253 = vsel %vm250, %v239, 0
          %255 = vmatprep.subr.mxu0 %v253
          %256 = vmatpush1.msra.mxu0 %v251
          %257 = vmatprep.subr.mxu0 0.0
          %258 = vmatpush1.msra.mxu0 0.0
          %259 = vmatprep.subr.mxu0 0.0
          %260 = vmatpush1.msra.mxu0 0.0
          %261 = vmatprep.subr.mxu0 0.0
          %262 = vmatpush1.msra.mxu0 0.0
          %263 = vmatprep.subr.mxu0 0.0
          %264 = vmatpush1.msra.mxu0 0.0
          %265 = vmatprep.subr.mxu0 0.0
          %266 = vmatpush1.msra.mxu0 0.0
          %267 = vmatprep.subr.mxu0 0.0
          %268 = vmatpush1.msra.mxu0 0.0
          %269 = vmatprep.subr.mxu0 0.0
          %270 = vmatpush1.msra.mxu0 0.0
          %271 = vmatprep.subr.mxu0 0.0
          %272 = vmatpush1.msra.mxu0 0.0
          %273 = vmatprep.subr.mxu0 0.0
          %274 = vmatpush1.msra.mxu0 0.0
          %275 = vmatprep.subr.mxu0 0.0
          %276 = vmatpush1.msra.mxu0 0.0
          %277 = vmatprep.subr.mxu0 0.0
          %278 = vmatpush1.msra.mxu0 0.0
          %279 = vmatprep.subr.mxu0 0.0
          %280 = vmatpush1.msra.mxu0 0.0
          %281 = vmatprep.subr.mxu0 0.0
          %282 = vmatpush1.msra.mxu0 0.0
          %283 = vmatprep.subr.mxu0 0.0
          %284 = vmatpush1.msra.mxu0 0.0
          %285 = vmatprep.subr.mxu0 0.0
          %286 = vmatpush1.msra.mxu0 0.0
          %287 = vmatprep.subr.mxu0 0.0
          %288 = vmatpush1.msra.mxu0 0.0
          %289 = vmatprep.subr.mxu0 0.0
          %290 = vmatpush1.msra.mxu0 0.0
          %291 = vmatprep.subr.mxu0 0.0
          %292 = vmatpush1.msra.mxu0 0.0
          %293 = vmatprep.subr.mxu0 0.0
          %294 = vmatpush1.msra.mxu0 0.0
          %295 = vmatprep.subr.mxu0 0.0
          %296 = vmatpush1.msra.mxu0 0.0
          %297 = vmatprep.subr.mxu0 0.0
          %298 = vmatpush1.msra.mxu0 0.0
          %299 = vmatprep.subr.mxu0 0.0
          %300 = vmatpush1.msra.mxu0 0.0
          %301 = vmatprep.subr.mxu0 0.0
          %302 = vmatpush1.msra.mxu0 0.0
          %303 = vmatprep.subr.mxu0 0.0
          %304 = vmatpush1.msra.mxu0 0.0
          %305 = vmatprep.subr.mxu0 0.0
          %306 = vmatpush1.msra.mxu0 0.0
          %307 = vmatprep.subr.mxu0 0.0
          %308 = vmatpush1.msra.mxu0 0.0
          %309 = vmatprep.subr.mxu0 0.0
          %310 = vmatpush1.msra.mxu0 0.0
          %311 = vmatprep.subr.mxu0 0.0
          %312 = vmatpush1.msra.mxu0 0.0
          %313 = vmatprep.subr.mxu0 0.0
          %314 = vmatpush1.msra.mxu0 0.0
          %315 = vmatprep.subr.mxu0 0.0
          %316 = vmatpush1.msra.mxu0 0.0
          %317 = vmatprep.subr.mxu0 0.0
          %318 = vmatpush1.msra.mxu0 0.0
          %319 = vmatprep.mubr.f32.mxu0 0.0
          %320 = vmatmul.mubr.f32.gmra.mrb[0].mxu0 %v242
          %v321 = vpop.f32.mrb[0].mxu0
          %v322 = vadd.f32 %v226, %v321
          %v323 = vpop.f32.mrb[0].mxu0
          %v324 = vadd.f32 %v226, %v323
          %325 = vmatprep.mubr.f32.mxu0 0.0
          %326 = vmatmul.mubr.f32.gmra.mrb[0].mxu0 %v245
          %v327 = vpop.f32.mrb[0].mxu0
          %v328 = vadd.f32 %v231, %v327
          %v329 = vpop.f32.mrb[0].mxu0
          %v330 = vadd.f32 %v231, %v329
          %331 = vmatprep.mubr.f32.mxu0 0.0
          %332 = vmatmul.mubr.f32.gmra.mrb[0].mxu0 %v248
          %v333 = vpop.f32.mrb[0].mxu0
          %v334 = vadd.f32 %v236, %v333
          %v335 = vpop.f32.mrb[0].mxu0
          %v336 = vadd.f32 %v236, %v335
          %337 = vdwg.mxu0
          %v338 = vpack.c.bf16 %v322, %v322
          %v339 = vpack.c.bf16 %v324, %v324
          %v342 = vunpack.c.l.b16 %v338
          %v343 = vunpack.c.l.b16 %v339
          %v344 = vpack.c.b16 %v343, %v342
          %346 = vst [vmem:[#allocation2] sm:$0xff] %v344
          %v347 = vpack.c.bf16 %v328, %v328
          %v348 = vpack.c.bf16 %v330, %v330
          %v351 = vunpack.c.l.b16 %v347
          %v352 = vunpack.c.l.b16 %v348
          %v353 = vpack.c.b16 %v352, %v351
          %355 = vst [vmem:[#allocation3] sm:$0xff] %v353
          %v356 = vpack.c.bf16 %v334, %v334
          %v357 = vpack.c.bf16 %v336, %v336
          %v360 = vunpack.c.l.b16 %v356
          %v361 = vunpack.c.l.b16 %v357
          %v362 = vpack.c.b16 %v361, %v360
          %vm364 = vcmask 1042432
          %vm365 = vsmask.f32 2304
          %vm366 = vmand %vm364, %vm365
          %vm367 = vcmask 1046532
          %vm368 = vsmask.f32 6400
          %vm369 = vmand %vm367, %vm368
          %vm370 = vmor %vm369, %vm366
          %v371 = vld [vmem:[#allocation4] sm:$0x77]
          %v372 = vsel %vm370, %v362, %v371
          %373 = vst [vmem:[#allocation4] sm:$0x77] %v372
        $region40: #{tpu_custom_call.1} parent=35 // pred_fallthru
          _
        %s374 = smul.u32 %s24, 128
        %s375 = sshra.s32 %s374, 7
        %s376 = sand.u32 %s374, 127
        %s377 = smul.addr %s375, 4
        %s378 = scalar_lea.vmem [#allocation3], %s377
        %v379 = vld [vmem:[%s378] sm:$0xf]
        %v380 = vld [vmem:[#allocation2] sm:$0xff]
        %381 = vxpose.xlu0.c.b16.start [1/8] %v379, 128
        %382 = vxpose.xlu0.c.b16.cont [2/8] 0, 128
        %383 = vxpose.xlu0.c.b16.cont [3/8] 0, 128
        %384 = vxpose.xlu0.c.b16.cont [4/8] 0, 128
        %385 = vxpose.xlu0.c.b16.cont [5/8] 0, 128
        %386 = vxpose.xlu0.c.b16.cont [6/8] 0, 128
        %387 = vxpose.xlu0.c.b16.cont [7/8] 0, 128
        %388 = vxpose.xlu0.c.b16.end [8/8] 0, 128
        %v389 = vpop.trf.xlu0
        %v390 = vpop.trf.xlu0
        %v391 = vpop.trf.xlu0
        %v392 = vpop.trf.xlu0
        %v393 = vpop.trf.xlu0
        %v394 = vpop.trf.xlu0
        %v395 = vpop.trf.xlu0
        %v396 = vpop.trf.xlu0
        %v398 = vunpack.c.l.b16 %v380
        %v399 = vunpack.c.h.b16 %v380
        %v400 = vpack.c.b16 %v398, %v398
        %v401 = vpack.c.b16 %v399, %v399
        %vm402 = vcmask 64512
        %v404 = vsel %vm402, %v389, 0
        %v407 = vsel %vm402, %v390, 0
        %v410 = vsel %vm402, %v391, 0
        %v413 = vsel %vm402, %v392, 0
        %v416 = vsel %vm402, %v393, 0
        %v419 = vsel %vm402, %v394, 0
        %v422 = vsel %vm402, %v395, 0
        %v425 = vsel %vm402, %v396, 0
        %vm427 = vcmask 1043456
        %v429 = vsel %vm427, %v400, 0
        %v432 = vsel %vm427, %v401, 0
        %434 = vmatprep.subr.bf16.mxu0 %v432
        %435 = vmatpush1.bf16.msra.mxu0 %v429
        %436 = vmatprep.subr.bf16.mxu0 0
        %437 = vmatpush1.bf16.msra.mxu0 0
        %438 = vmatprep.subr.bf16.mxu0 0
        %439 = vmatpush1.bf16.msra.mxu0 0
        %440 = vmatprep.subr.bf16.mxu0 0
        %441 = vmatpush1.bf16.msra.mxu0 0
        %442 = vmatprep.subr.bf16.mxu0 0
        %443 = vmatpush1.bf16.msra.mxu0 0
        %444 = vmatprep.subr.bf16.mxu0 0
        %445 = vmatpush1.bf16.msra.mxu0 0
        %446 = vmatprep.subr.bf16.mxu0 0
        %447 = vmatpush1.bf16.msra.mxu0 0
        %448 = vmatprep.subr.bf16.mxu0 0
        %449 = vmatpush1.bf16.msra.mxu0 0
        %450 = vmatprep.subr.bf16.mxu0 0
        %451 = vmatpush1.bf16.msra.mxu0 0
        %452 = vmatprep.subr.bf16.mxu0 0
        %453 = vmatpush1.bf16.msra.mxu0 0
        %454 = vmatprep.subr.bf16.mxu0 0
        %455 = vmatpush1.bf16.msra.mxu0 0
        %456 = vmatprep.subr.bf16.mxu0 0
        %457 = vmatpush1.bf16.msra.mxu0 0
        %458 = vmatprep.subr.bf16.mxu0 0
        %459 = vmatpush1.bf16.msra.mxu0 0
        %460 = vmatprep.subr.bf16.mxu0 0
        %461 = vmatpush1.bf16.msra.mxu0 0
        %462 = vmatprep.subr.bf16.mxu0 0
        %463 = vmatpush1.bf16.msra.mxu0 0
        %464 = vmatprep.subr.bf16.mxu0 0
        %465 = vmatpush1.bf16.msra.mxu0 0
        %466 = vmatprep.mubr.bf16.mxu0 0
        %467 = vmatmul.mubr.bf16.gmra.mrb[0].mxu0 %v404
        %v468 = vpop.f32.mrb[0].mxu0
        %v469 = vadd.f32 0.0, %v468
        %v470 = vpop.f32.mrb[0].mxu0
        %v471 = vadd.f32 0.0, %v470
        %v472 = vpop.f32.mrb[0].mxu0
        %v473 = vadd.f32 0.0, %v472
        %v474 = vpop.f32.mrb[0].mxu0
        %v475 = vadd.f32 0.0, %v474
        %476 = vmatprep.mubr.bf16.mxu0 0
        %477 = vmatmul.mubr.bf16.gmra.mrb[0].mxu0 %v407
        %v478 = vpop.f32.mrb[0].mxu0
        %v479 = vadd.f32 0.0, %v478
        %v480 = vpop.f32.mrb[0].mxu0
        %v481 = vadd.f32 0.0, %v480
        %v482 = vpop.f32.mrb[0].mxu0
        %v483 = vadd.f32 0.0, %v482
        %v484 = vpop.f32.mrb[0].mxu0
        %v485 = vadd.f32 0.0, %v484
        %486 = vmatprep.mubr.bf16.mxu0 0
        %487 = vmatmul.mubr.bf16.gmra.mrb[0].mxu0 %v410
        %v488 = vpop.f32.mrb[0].mxu0
        %v489 = vadd.f32 0.0, %v488
        %v490 = vpop.f32.mrb[0].mxu0
        %v491 = vadd.f32 0.0, %v490
        %v492 = vpop.f32.mrb[0].mxu0
        %v493 = vadd.f32 0.0, %v492
        %v494 = vpop.f32.mrb[0].mxu0
        %v495 = vadd.f32 0.0, %v494
        %496 = vmatprep.mubr.bf16.mxu0 0
        %497 = vmatmul.mubr.bf16.gmra.mrb[0].mxu0 %v413
        %v498 = vpop.f32.mrb[0].mxu0
        %v499 = vadd.f32 0.0, %v498
        %v500 = vpop.f32.mrb[0].mxu0
        %v501 = vadd.f32 0.0, %v500
        %v502 = vpop.f32.mrb[0].mxu0
        %v503 = vadd.f32 0.0, %v502
        %v504 = vpop.f32.mrb[0].mxu0
        %v505 = vadd.f32 0.0, %v504
        %506 = vmatprep.mubr.bf16.mxu0 0
        %507 = vmatmul.mubr.bf16.gmra.mrb[0].mxu0 %v416
        %v508 = vpop.f32.mrb[0].mxu0
        %v509 = vadd.f32 0.0, %v508
        %v510 = vpop.f32.mrb[0].mxu0
        %v511 = vadd.f32 0.0, %v510
        %v512 = vpop.f32.mrb[0].mxu0
        %v513 = vadd.f32 0.0, %v512
        %v514 = vpop.f32.mrb[0].mxu0
        %v515 = vadd.f32 0.0, %v514
        %516 = vmatprep.mubr.bf16.mxu0 0
        %517 = vmatmul.mubr.bf16.gmra.mrb[0].mxu0 %v419
        %v518 = vpop.f32.mrb[0].mxu0
        %v519 = vadd.f32 0.0, %v518
        %v520 = vpop.f32.mrb[0].mxu0
        %v521 = vadd.f32 0.0, %v520
        %v522 = vpop.f32.mrb[0].mxu0
        %v523 = vadd.f32 0.0, %v522
        %v524 = vpop.f32.mrb[0].mxu0
        %v525 = vadd.f32 0.0, %v524
        %526 = vmatprep.mubr.bf16.mxu0 0
        %527 = vmatmul.mubr.bf16.gmra.mrb[0].mxu0 %v422
        %v528 = vpop.f32.mrb[0].mxu0
        %v529 = vadd.f32 0.0, %v528
        %v530 = vpop.f32.mrb[0].mxu0
        %v531 = vadd.f32 0.0, %v530
        %v532 = vpop.f32.mrb[0].mxu0
        %v533 = vadd.f32 0.0, %v532
        %v534 = vpop.f32.mrb[0].mxu0
        %v535 = vadd.f32 0.0, %v534
        %536 = vmatprep.mubr.bf16.mxu0 0
        %537 = vmatmul.mubr.bf16.gmra.mrb[0].mxu0 %v425
        %v538 = vpop.f32.mrb[0].mxu0
        %v539 = vadd.f32 0.0, %v538
        %v540 = vpop.f32.mrb[0].mxu0
        %v541 = vadd.f32 0.0, %v540
        %v542 = vpop.f32.mrb[0].mxu0
        %v543 = vadd.f32 0.0, %v542
        %v544 = vpop.f32.mrb[0].mxu0
        %v545 = vadd.f32 0.0, %v544
        %546 = vdwg.mxu0
        %v547 = vmax.f32 %v469, %v471
        %548 = vmax.xlane.f32.xlu0 %v547
        %v549 = vpop.xlane.xlu0 %548
        %v550 = vmax.f32 %v473, %v475
        %551 = vmax.xlane.f32.xlu0 %v550
        %v552 = vpop.xlane.xlu0 %551
        %v553 = vmax.f32 %v479, %v481
        %554 = vmax.xlane.f32.xlu0 %v553
        %v555 = vpop.xlane.xlu0 %554
        %v556 = vmax.f32 %v483, %v485
        %557 = vmax.xlane.f32.xlu0 %v556
        %v558 = vpop.xlane.xlu0 %557
        %v559 = vmax.f32 %v489, %v491
        %560 = vmax.xlane.f32.xlu0 %v559
        %v561 = vpop.xlane.xlu0 %560
        %v562 = vmax.f32 %v493, %v495
        %563 = vmax.xlane.f32.xlu0 %v562
        %v564 = vpop.xlane.xlu0 %563
        %v565 = vmax.f32 %v499, %v501
        %566 = vmax.xlane.f32.xlu0 %v565
        %v567 = vpop.xlane.xlu0 %566
        %v568 = vmax.f32 %v503, %v505
        %569 = vmax.xlane.f32.xlu0 %v568
        %v570 = vpop.xlane.xlu0 %569
        %v571 = vmax.f32 %v509, %v511
        %572 = vmax.xlane.f32.xlu0 %v571
        %v573 = vpop.xlane.xlu0 %572
        %v574 = vmax.f32 %v513, %v515
        %575 = vmax.xlane.f32.xlu0 %v574
        %v576 = vpop.xlane.xlu0 %575
        %v577 = vmax.f32 %v519, %v521
        %578 = vmax.xlane.f32.xlu0 %v577
        %v579 = vpop.xlane.xlu0 %578
        %v580 = vmax.f32 %v523, %v525
        %581 = vmax.xlane.f32.xlu0 %v580
        %v582 = vpop.xlane.xlu0 %581
        %v583 = vmax.f32 %v529, %v531
        %584 = vmax.xlane.f32.xlu0 %v583
        %v585 = vpop.xlane.xlu0 %584
        %v586 = vmax.f32 %v533, %v535
        %587 = vmax.xlane.f32.xlu0 %v586
        %v588 = vpop.xlane.xlu0 %587
        %v589 = vmax.f32 %v539, %v541
        %590 = vmax.xlane.f32.xlu0 %v589
        %v591 = vpop.xlane.xlu0 %590
        %v592 = vmax.f32 %v543, %v545
        %593 = vmax.xlane.f32.xlu0 %v592
        %v594 = vpop.xlane.xlu0 %593
        %v595 = vsub.f32 %v469, %v549
        %v596 = vsub.f32 %v471, %v549
        %v597 = vsub.f32 %v473, %v552
        %v598 = vsub.f32 %v475, %v552
        %v599 = vsub.f32 %v479, %v555
        %v600 = vsub.f32 %v481, %v555
        %v601 = vsub.f32 %v483, %v558
        %v602 = vsub.f32 %v485, %v558
        %v603 = vsub.f32 %v489, %v561
        %v604 = vsub.f32 %v491, %v561
        %v605 = vsub.f32 %v493, %v564
        %v606 = vsub.f32 %v495, %v564
        %v607 = vsub.f32 %v499, %v567
        %v608 = vsub.f32 %v501, %v567
        %v609 = vsub.f32 %v503, %v570
        %v610 = vsub.f32 %v505, %v570
        %v611 = vsub.f32 %v509, %v573
        %v612 = vsub.f32 %v511, %v573
        %v613 = vsub.f32 %v513, %v576
        %v614 = vsub.f32 %v515, %v576
        %v615 = vsub.f32 %v519, %v579
        %v616 = vsub.f32 %v521, %v579
        %v617 = vsub.f32 %v523, %v582
        %v618 = vsub.f32 %v525, %v582
        %v619 = vsub.f32 %v529, %v585
        %v620 = vsub.f32 %v531, %v585
        %v621 = vsub.f32 %v533, %v588
        %v622 = vsub.f32 %v535, %v588
        %v623 = vsub.f32 %v539, %v591
        %v624 = vsub.f32 %v541, %v591
        %v625 = vsub.f32 %v543, %v594
        %v626 = vsub.f32 %v545, %v594
        %v627 = vmul.f32 %v595, 1.442695
        %v628 = vpow.pop %v627
        %v629 = vmul.f32 %v596, 1.442695
        %v630 = vpow.pop %v629
        %v631 = vmul.f32 %v597, 1.442695
        %v632 = vpow.pop %v631
        %v633 = vmul.f32 %v598, 1.442695
        %v634 = vpow.pop %v633
        %v635 = vmul.f32 %v599, 1.442695
        %v636 = vpow.pop %v635
        %v637 = vmul.f32 %v600, 1.442695
        %v638 = vpow.pop %v637
        %v639 = vmul.f32 %v601, 1.442695
        %v640 = vpow.pop %v639
        %v641 = vmul.f32 %v602, 1.442695
        %v642 = vpow.pop %v641
        %v643 = vmul.f32 %v603, 1.442695
        %v644 = vpow.pop %v643
        %v645 = vmul.f32 %v604, 1.442695
        %v646 = vpow.pop %v645
        %v647 = vmul.f32 %v605, 1.442695
        %v648 = vpow.pop %v647
        %v649 = vmul.f32 %v606, 1.442695
        %v650 = vpow.pop %v649
        %v651 = vmul.f32 %v607, 1.442695
        %v652 = vpow.pop %v651
        %v653 = vmul.f32 %v608, 1.442695
        %v654 = vpow.pop %v653
        %v655 = vmul.f32 %v609, 1.442695
        %v656 = vpow.pop %v655
        %v657 = vmul.f32 %v610, 1.442695
        %v658 = vpow.pop %v657
        %v659 = vmul.f32 %v611, 1.442695
        %v660 = vpow.pop %v659
        %v661 = vmul.f32 %v612, 1.442695
        %v662 = vpow.pop %v661
        %v663 = vmul.f32 %v613, 1.442695
        %v664 = vpow.pop %v663
        %v665 = vmul.f32 %v614, 1.442695
        %v666 = vpow.pop %v665
        %v667 = vmul.f32 %v615, 1.442695
        %v668 = vpow.pop %v667
        %v669 = vmul.f32 %v616, 1.442695
        %v670 = vpow.pop %v669
        %v671 = vmul.f32 %v617, 1.442695
        %v672 = vpow.pop %v671
        %v673 = vmul.f32 %v618, 1.442695
        %v674 = vpow.pop %v673
        %v675 = vmul.f32 %v619, 1.442695
        %v676 = vpow.pop %v675
        %v677 = vmul.f32 %v620, 1.442695
        %v678 = vpow.pop %v677
        %v679 = vmul.f32 %v621, 1.442695
        %v680 = vpow.pop %v679
        %v681 = vmul.f32 %v622, 1.442695
        %v682 = vpow.pop %v681
        %v683 = vmul.f32 %v623, 1.442695
        %v684 = vpow.pop %v683
        %v685 = vmul.f32 %v624, 1.442695
        %v686 = vpow.pop %v685
        %v687 = vmul.f32 %v625, 1.442695
        %v688 = vpow.pop %v687
        %v689 = vmul.f32 %v626, 1.442695
        %v690 = vpow.pop %v689
        %v691 = vld [vmem:[#allocation4] sm:$0x77]
        %v692 = vpack.c.bf16 %v632, %v628
        %v693 = vpack.c.bf16 %v634, %v630
        %v694 = vpack.c.bf16 %v640, %v636
        %v695 = vpack.c.bf16 %v642, %v638
        %v696 = vpack.c.bf16 %v648, %v644
        %v697 = vpack.c.bf16 %v650, %v646
        %v698 = vpack.c.bf16 %v656, %v652
        %v699 = vpack.c.bf16 %v658, %v654
        %v700 = vpack.c.bf16 %v664, %v660
        %v701 = vpack.c.bf16 %v666, %v662
        %v702 = vpack.c.bf16 %v672, %v668
        %v703 = vpack.c.bf16 %v674, %v670
        %v704 = vpack.c.bf16 %v680, %v676
        %v705 = vpack.c.bf16 %v682, %v678
        %v706 = vpack.c.bf16 %v688, %v684
        %v707 = vpack.c.bf16 %v690, %v686
        %v709 = vunpack.c.l.b16 %v691
        %v710 = vunpack.c.h.b16 %v691
        %v711 = vpack.c.b16 %v709, %v709
        %v712 = vpack.c.b16 %v710, %v710
        %715 = vmatprep.subr.bf16.mxu0 %v693
        %716 = vmatpush1.bf16.xpose.msra.mxu0 %v692
        %717 = vmatprep.subr.bf16.mxu0 %v695
        %718 = vmatpush1.bf16.xpose.msra.mxu0 %v694
        %719 = vmatprep.subr.bf16.mxu0 %v697
        %720 = vmatpush1.bf16.xpose.msra.mxu0 %v696
        %721 = vmatprep.subr.bf16.mxu0 %v699
        %722 = vmatpush1.bf16.xpose.msra.mxu0 %v698
        %723 = vmatprep.subr.bf16.mxu0 %v701
        %724 = vmatpush1.bf16.xpose.msra.mxu0 %v700
        %725 = vmatprep.subr.bf16.mxu0 %v703
        %726 = vmatpush1.bf16.xpose.msra.mxu0 %v702
        %727 = vmatprep.subr.bf16.mxu0 %v705
        %728 = vmatpush1.bf16.xpose.msra.mxu0 %v704
        %729 = vmatprep.subr.bf16.mxu0 %v707
        %730 = vmatpush1.bf16.xpose.msra.mxu0 %v706
        %731 = vmatprep.subr.bf16.mxu0 0
        %732 = vmatpush1.bf16.xpose.msra.mxu0 0
        %733 = vmatprep.subr.bf16.mxu0 0
        %734 = vmatpush1.bf16.xpose.msra.mxu0 0
        %735 = vmatprep.subr.bf16.mxu0 0
        %736 = vmatpush1.bf16.xpose.msra.mxu0 0
        %737 = vmatprep.subr.bf16.mxu0 0
        %738 = vmatpush1.bf16.xpose.msra.mxu0 0
        %739 = vmatprep.subr.bf16.mxu0 0
        %740 = vmatpush1.bf16.xpose.msra.mxu0 0
        %741 = vmatprep.subr.bf16.mxu0 0
        %742 = vmatpush1.bf16.xpose.msra.mxu0 0
        %743 = vmatprep.subr.bf16.mxu0 0
        %744 = vmatpush1.bf16.xpose.msra.mxu0 0
        %745 = vmatprep.subr.bf16.mxu0 0
        %746 = vmatpush1.bf16.xpose.msra.mxu0 0
        %747 = vmatprep.mubr.bf16.mxu0 %v712
        %748 = vmatmul.mubr.bf16.gmra.mrb[0].mxu0 %v711
        %v749 = vpop.f32.mrb[0].mxu0
        %v750 = vadd.f32 0.0, %v749
        %v751 = vpop.f32.mrb[0].mxu0
        %v752 = vpop.f32.mrb[0].mxu0
        %v753 = vpop.f32.mrb[0].mxu0
        %754 = vdwg.mxu0
        %v755 = vrcp.pop %v750
        %v756 = vlaneseq
        %v757 = vshrl.u32 %v756, 7
        %v758 = vsub.s32 4, %v757
        %v759 = vrot.slane %v755, %v758
        %v760 = vmul.f32 %v750, %v759
        %s761 = sld [smem:[#allocation5]]
        %s762 = smul.addr %s375, 4
        %s763 = scalar_lea.vmem %s210, %s762
        %v764 = vld [vmem:[%s763] sm:$0xf]
        %v765 = vstv %s761
        %v766 = vmul.f32 %v765, %v760
        %s767 = ssub.f32 1.0, %s761
        %v768 = vstv %s767
        %v769 = vmul.f32 %v768, %v764
        %v770 = vadd.f32 %v766, %v769
        %771 = vst [vmem:[%s205] sm:$0xf] %v770
        %s772 = sand.u32 %s130, 1
        %s773 = scalar_lea.sflag [#allocation7], %s772
        %s774 = sand.u32 %s130, 1
        %s775 = smul.addr %s774, 4
        %s776 = scalar_lea.vmem [#allocation6], %s775
        // Predicated region
        $region41: #{tpu_custom_call.1} parent=35 // pred_check
          %p777 = pneg %p140
        $region42: #{tpu_custom_call.1} parent=35 // pred_check_branch
          %779 = sbr.rel (%p777) target = $region44
        $region43: #{tpu_custom_call.1} parent=35 // pred_region
          %s781 = ssub.s32 64, 64
          %782 = vsyncadd %s773, %s781
          %s783 = smul.addr %s23, 2
          %s784 = sadd.s32 %s24, %s783
          %s785 = smul.addr %s784, 64
          %s786 = scalar_lea.hbm %s4, %s785
          %s788 = sshll.u32 %s776, 4
          %s789 = int_to_ptr.vmem [resolvable:$true] %s788
          %791 = dma.vmem_to_hbm [thread:$0]  %s789, 64, %s786, %s773
        $region44: #{tpu_custom_call.1} parent=35 // pred_fallthru
          _
      $region36: #{tpu_custom_call.1} parent=5 // pred_fallthru
        _
      %p792 = scmp.le.s32.totalorder 2, %s14
      // Predicated region
      $region45: #{tpu_custom_call.1} parent=5 // pred_check
        %p793 = pneg %p792
      $region46: #{tpu_custom_call.1} parent=5 // pred_check_branch
        %795 = sbr.rel (%p793) target = $region48
      $region47: #{tpu_custom_call.1} parent=5 // pred_region
        %s796 = ssub.s32 %s14, 2
        // Predicated region
        $region49: #{tpu_custom_call.1} parent=47 // pred_check
          %p797 = pneg %p146
        $region50: #{tpu_custom_call.1} parent=47 // pred_check_branch
          %799 = sbr.rel (%p797) target = $region52
        $region51: #{tpu_custom_call.1} parent=47 // pred_region
          %s800 = sand.u32 %s131, 1
          %s801 = scalar_lea.sflag [#allocation7], %s800
          %s802 = sand.u32 %s131, 1
          %s803 = smul.addr %s802, 4
          %s804 = scalar_lea.vmem [#allocation6], %s803
          %805 = dma.done %s801, 64
        $region52: #{tpu_custom_call.1} parent=47 // pred_fallthru
          _
      $region48: #{tpu_custom_call.1} parent=5 // pred_fallthru
        _
    $region6: #{tpu_custom_call.1} parent=1 // loop_footer
      %s18 = sadd.s32 1, %s14
    $region7: #{tpu_custom_call.1} parent=1 // loop_footer_branch
      %13 = sbr.rel target = $region3
    $region8: #{tpu_custom_call.1} parent=1 // loop_exit
      _
    %806 = vsyncpa [#allocation7], 1
    %s807 = scalar_lea.sflag [#allocation7], 1
    %808 = vsyncpa %s807, 1

</llo_original>
